<compile_context>
chip_gen: v7x
topology: tpu7x:2x2x1
jax: 0.10.0
libtpu: 0.0.40
codegen_flags: <defaults>
</compile_context>

<pallas_src>
import jax
import jax.numpy as jnp
from jax.experimental import pallas as pl
from jax.experimental.pallas import tpu as pltpu


def _round_up(x, m):
    return ((x + m - 1) // m) * m


# ----------------------------------------------------------------------------
# Pallas kernel factory (specialized on conditioner depth and packed width).
# ----------------------------------------------------------------------------
def make_coupling_kernel(depth, pd):
    """pd = P * D, the packed feature width (128 when D divides 128)."""
    n_in = 4 + 2 * depth + 2  # u, mask, inv_mask_blk, scale, depth*(w,b), w_ts, b_ts

    def kernel(*refs):
        u_ref, mask_ref, inv_mask_blk_ref, scale_ref = refs[:4]
        hidden_refs = refs[4:4 + 2 * depth]
        wts_ref, bts_ref = refs[4 + 2 * depth:n_in]
        x_ref, ldj_ref = refs[n_in:]

        u = u_ref[...]                                  # (tile, pd) f32, lane-dense

        # Conditioner MLP.  The (binary) mask is pre-folded into the first
        # weight matrix, so feeding `u` directly equals feeding `mask * u`.
        h = u
        for li in range(depth):
            w = hidden_refs[2 * li][...]
            b = hidden_refs[2 * li + 1][...]
            h = jnp.maximum(
                jnp.dot(h, w, preferred_element_type=jnp.float32) + b, 0.0)

        # Fused final projection: t occupies lanes [0, pd), s lanes [pd, 2*pd).
        # pd is a 128-lane boundary, so the slice is a vreg split (no relayout).
        ts = jnp.dot(h, wts_ref[...], preferred_element_type=jnp.float32) + bts_ref[...]
        t = ts[:, :pd]

        # ScaledTanh: learnable scalar (from SMEM) times tanh.
        # TODO(synk): ScaledTanh definition not included in the reference
        # snippet; implemented as a learnable scalar (init=1.0) times tanh.
        s = scale_ref[0, 0] * jnp.tanh(ts[:, pd:])

        # Affine coupling combine as a single select (mask is strictly {0,1}):
        #   x = mask*u + inv_mask*(u*exp(s) + t)  ==  where(mask==1, u, u*exp(s)+t)
        y = u * jnp.exp(s) + t
        x = jnp.where(mask_ref[...] > 0.5, u, y)

        # log|det J| per original row via the MXU: s_packed @ kron(I_P, inv_mask_col)
        # -> (tile, P), one ldj per packed sub-row.
        ldj = jnp.dot(s, inv_mask_blk_ref[...], preferred_element_type=jnp.float32)

        x_ref[...] = x
        ldj_ref[...] = ldj

    return kernel


# ----------------------------------------------------------------------------
# Wrapper: lane packing, parameter plumbing, pallas_call with a batch grid.
# ----------------------------------------------------------------------------
def coupling_layer_1d_forward(u, params, target_rows=8192):
    """Forward pass of CouplingLayer1d.

    u: (N, D) float32
    params: dict with mask (1,D), inv_mask (1,D), hidden [(w,b)...], wf, bf, scale
    Returns: x (N, D), log_det_jacobian (N, 1)
    """
    n, d = u.shape

    # Lane-pack factor: P original rows share one 128-lane vreg row.
    P = 128 // d if (d < 128 and 128 % d == 0) else 1
    pd = P * d

    mask_row = params["mask"]                         # (1, D), binary {0,1}
    inv_mask_row = params["inv_mask"]                 # (1, D)

    # Fold the mask into the first hidden weight:  (mask*u) @ w0 == u @ (mask_col*w0)
    hidden = list(params["hidden"])
    w0, b0 = hidden[0]
    hidden[0] = (mask_row.reshape(d, 1) * w0, b0)

    # Split torch.chunk order: first half of the final projection -> t, second -> s.
    wf, bf = params["wf"], params["bf"]
    wt, ws = wf[:, :d], wf[:, d:]
    bt, bs = bf[:, :d], bf[:, d:]
    scale = params["scale"]                           # (1, 1) f32 -> SMEM

    eye = jnp.eye(P, dtype=jnp.float32)
    kron_w = (lambda w: jnp.kron(eye, w)) if P > 1 else (lambda w: w)
    tile_b = (lambda b: jnp.tile(b, (1, P))) if P > 1 else (lambda b: b)

    hidden_p = [(kron_w(w), tile_b(b)) for (w, b) in hidden]
    # Fused t/s head: both halves start on 128-lane boundaries.
    w_ts = jnp.concatenate([kron_w(wt), kron_w(ws)], axis=1)   # (P*units, 2*pd)
    b_ts = jnp.concatenate([tile_b(bt), tile_b(bs)], axis=1)   # (1, 2*pd)
    mask_p = tile_b(mask_row)                                  # (1, pd)
    inv_mask_blk = (jnp.kron(eye, inv_mask_row.reshape(d, 1))
                    if P > 1 else inv_mask_row.reshape(d, 1))  # (pd, P)

    # Lane-pack the batch: (N, D) -> (N/P, pd).  Row-major reshape => free
    # relabeling, no HBM copy.  Pad only if N is not a multiple of P (<= P-1 rows).
    n_pack = _round_up(n, P)
    u_in = u if n_pack == n else jnp.pad(u, ((0, n_pack - n), (0, 0)))
    packed_n = n_pack // P
    u_p = u_in.reshape(packed_n, pd)

    depth = len(hidden_p)

    # Tile selection: big tiles amortize the ~0.35us/step overhead; cap so the
    # grid keeps >= 2 steps for v7x's two TensorCores; always a multiple of 8.
    tgt = _round_up(max(target_rows // P, 8), 8)
    tile = min(tgt, max(8, _round_up(pl.cdiv(packed_n, 2), 8)))
    grid = (pl.cdiv(packed_n, tile),)   # ragged last block handled by Pallas

    def resident(arr):
        # Whole-array block, same block every grid step -> stays VMEM-resident.
        return pl.BlockSpec(arr.shape, lambda i: (0, 0))

    in_specs = [
        pl.BlockSpec((tile, pd), lambda i: (i, 0)),                   # u (streamed)
        resident(mask_p),                                             # packed mask
        resident(inv_mask_blk),                                       # ldj reducer
        pl.BlockSpec((1, 1), lambda i: (0, 0),
                     memory_space=pltpu.MemorySpace.SMEM),            # scale scalar
    ]
    operands = [u_p, mask_p, inv_mask_blk, scale]
    for (w, b) in hidden_p:
        in_specs += [resident(w), resident(b)]
        operands += [w, b]
    in_specs += [resident(w_ts), resident(b_ts)]
    operands += [w_ts, b_ts]

    out_shape = (
        jax.ShapeDtypeStruct((packed_n, pd), jnp.float32),
        jax.ShapeDtypeStruct((packed_n, P), jnp.float32),
    )
    out_specs = (
        pl.BlockSpec((tile, pd), lambda i: (i, 0)),
        pl.BlockSpec((tile, P), lambda i: (i, 0)),
    )

    x_p, ldj_p = pl.pallas_call(
        make_coupling_kernel(depth, pd),
        out_shape=out_shape,
        grid=grid,
        in_specs=in_specs,
        out_specs=out_specs,
        compiler_params=pltpu.CompilerParams(
            dimension_semantics=("parallel",)),        # megacore-shardable on v7x
    )(*operands)

    # Free row-major reshapes back to the original layout.
    x = x_p.reshape(n_pack, d)
    ldj = ldj_p.reshape(n_pack, 1)
    if n_pack != n:
        x, ldj = x[:n], ldj[:n]
    return x, ldj


# ----------------------------------------------------------------------------
# Deterministic parameter init mimicking torch.nn.Linear defaults.
# ----------------------------------------------------------------------------
def init_params(key, in_features, depth, units, reverse):
    def linear_init(key, fan_in, fan_out):
        kw, kb = jax.random.split(key)
        bound = 1.0 / jnp.sqrt(jnp.float32(fan_in))
        # stored as (fan_in, fan_out) == transposed torch weight, ready for x @ W
        w = jax.random.uniform(kw, (fan_in, fan_out), jnp.float32, -bound, bound)
        b = jax.random.uniform(kb, (1, fan_out), jnp.float32, -bound, bound)
        return w, b

    keys = jax.random.split(key, depth + 1)
    hidden = []
    fan_in = in_features
    for li in range(depth):
        w, b = linear_init(keys[li], fan_in, units)
        hidden.append((w, b))
        fan_in = units
    wf, bf = linear_init(keys[depth], fan_in, 2 * in_features)

    mask = (jnp.arange(in_features) % 2).astype(jnp.float32)
    inv_mask = 1.0 - mask
    if reverse:
        mask, inv_mask = inv_mask, mask

    scale = jnp.ones((1, 1), jnp.float32)  # ScaledTanh scalar, init 1.0

    return {
        "mask": mask.reshape(1, in_features),
        "inv_mask": inv_mask.reshape(1, in_features),
        "hidden": hidden,
        "wf": wf, "bf": bf,
        "scale": scale,
    }


# ----------------------------------------------------------------------------
# Pure-JAX reference (mirrors the PyTorch forward exactly).
# ----------------------------------------------------------------------------
def coupling_ref(u, p):
    mu = p["mask"] * u
    h = mu
    for w, b in p["hidden"]:
        h = jnp.maximum(h @ w + b, 0.0)
    ts = h @ p["wf"] + p["bf"]
    d = u.shape[1]
    t, s = ts[:, :d], ts[:, d:]
    s = p["scale"][0, 0] * jnp.tanh(s)
    x = mu + p["inv_mask"] * (u * jnp.exp(s) + t)
    ldj = jnp.sum(p["inv_mask"] * s, axis=1, keepdims=True)
    return x, ldj


if __name__ == "__main__":
    in_features = 16
    depth = 2
    units = 32
    reverse = False
    batch = 256          # packs to 32 rows of 128 lanes -> 2 grid steps of 16

    key = jax.random.PRNGKey(0)
    k_params, k_input = jax.random.split(key)

    params = init_params(k_params, in_features, depth, units, reverse)
    u = jax.random.normal(k_input, (batch, in_features), jnp.float32)

    x, ldj = coupling_layer_1d_forward(u, params)
    jax.block_until_ready((x, ldj))

    x_ref, ldj_ref = coupling_ref(u, params)
    assert jnp.allclose(x, x_ref, atol=1e-5, rtol=1e-5)
    assert jnp.allclose(ldj, ldj_ref, atol=1e-4, rtol=1e-5)

    print("KERNEL_OK")
</pallas_src>

<mosaic_0001>
module attributes {stable_mosaic.version = 11 : i64} {
  func.func @kernel(%arg0: i32, %arg1: memref<16x128xf32, #tpu.memory_space<vmem>>, %arg2: memref<1x128xf32, #tpu.memory_space<vmem>>, %arg3: memref<128x8xf32, #tpu.memory_space<vmem>>, %arg4: memref<1x1xf32, #tpu.memory_space<smem>>, %arg5: memref<128x256xf32, #tpu.memory_space<vmem>>, %arg6: memref<1x256xf32, #tpu.memory_space<vmem>>, %arg7: memref<256x256xf32, #tpu.memory_space<vmem>>, %arg8: memref<1x256xf32, #tpu.memory_space<vmem>>, %arg9: memref<256x256xf32, #tpu.memory_space<vmem>>, %arg10: memref<1x256xf32, #tpu.memory_space<vmem>>, %arg11: memref<16x128xf32, #tpu.memory_space<vmem>>, %arg12: memref<16x8xf32, #tpu.memory_space<vmem>>) attributes {dimension_semantics = [#tpu.dimension_semantics<parallel>], iteration_bounds = array<i64: 2>, scalar_prefetch = 0 : i64, scratch_operands = 0 : i64, tpu.core_type = #tpu.core_type<tc>, window_params = [{transform_indices = @transform_0, window_bounds = array<i64: 16, 128>}, {pipeline_mode = #tpu.pipeline_mode<synchronous>, transform_indices = @transform_1, window_bounds = array<i64: 1, 128>}, {pipeline_mode = #tpu.pipeline_mode<synchronous>, transform_indices = @transform_2, window_bounds = array<i64: 128, 8>}, {transform_indices = @transform_3, window_bounds = array<i64: 1, 1>}, {pipeline_mode = #tpu.pipeline_mode<synchronous>, transform_indices = @transform_4, window_bounds = array<i64: 128, 256>}, {pipeline_mode = #tpu.pipeline_mode<synchronous>, transform_indices = @transform_5, window_bounds = array<i64: 1, 256>}, {pipeline_mode = #tpu.pipeline_mode<synchronous>, transform_indices = @transform_6, window_bounds = array<i64: 256, 256>}, {pipeline_mode = #tpu.pipeline_mode<synchronous>, transform_indices = @transform_7, window_bounds = array<i64: 1, 256>}, {pipeline_mode = #tpu.pipeline_mode<synchronous>, transform_indices = @transform_8, window_bounds = array<i64: 256, 256>}, {pipeline_mode = #tpu.pipeline_mode<synchronous>, transform_indices = @transform_9, window_bounds = array<i64: 1, 256>}, {transform_indices = @transform_10, window_bounds = array<i64: 16, 128>}, {transform_indices = @transform_11, window_bounds = array<i64: 16, 8>}]} {
    %c0 = arith.constant 0 : index
    %c0_0 = arith.constant 0 : index
    %0 = vector.load %arg1[%c0, %c0_0] : memref<16x128xf32, #tpu.memory_space<vmem>>, vector<16x128xf32>
    %c0_1 = arith.constant 0 : index
    %c0_2 = arith.constant 0 : index
    %1 = vector.load %arg5[%c0_1, %c0_2] : memref<128x256xf32, #tpu.memory_space<vmem>>, vector<128x256xf32>
    %c0_3 = arith.constant 0 : index
    %c0_4 = arith.constant 0 : index
    %2 = vector.load %arg6[%c0_3, %c0_4] : memref<1x256xf32, #tpu.memory_space<vmem>>, vector<1x256xf32>
    %cst = arith.constant dense<0.000000e+00> : vector<16x256xf32>
    %3 = tpu.matmul %0, %1, %cst {dimension_numbers = #tpu.dot_dimension_numbers<[1], [0], [0], [1], [0, 0, 1, 1], [], []>} : vector<16x128xf32>, vector<128x256xf32>, vector<16x256xf32> -> vector<16x256xf32>
    %4 = vector.broadcast %2 : vector<1x256xf32> to vector<16x256xf32>
    %5 = arith.addf %3, %4 : vector<16x256xf32>
    %cst_5 = arith.constant 0.000000e+00 : f32
    %6 = vector.broadcast %cst_5 : f32 to vector<16x256xf32>
    %7 = arith.maximumf %5, %6 : vector<16x256xf32>
    %c0_6 = arith.constant 0 : index
    %c0_7 = arith.constant 0 : index
    %8 = vector.load %arg7[%c0_6, %c0_7] : memref<256x256xf32, #tpu.memory_space<vmem>>, vector<256x256xf32>
    %c0_8 = arith.constant 0 : index
    %c0_9 = arith.constant 0 : index
    %9 = vector.load %arg8[%c0_8, %c0_9] : memref<1x256xf32, #tpu.memory_space<vmem>>, vector<1x256xf32>
    %cst_10 = arith.constant dense<0.000000e+00> : vector<16x256xf32>
    %10 = tpu.matmul %7, %8, %cst_10 {dimension_numbers = #tpu.dot_dimension_numbers<[1], [0], [0], [1], [0, 0, 1, 1], [], []>} : vector<16x256xf32>, vector<256x256xf32>, vector<16x256xf32> -> vector<16x256xf32>
    %11 = vector.broadcast %9 : vector<1x256xf32> to vector<16x256xf32>
    %12 = arith.addf %10, %11 : vector<16x256xf32>
    %cst_11 = arith.constant 0.000000e+00 : f32
    %13 = vector.broadcast %cst_11 : f32 to vector<16x256xf32>
    %14 = arith.maximumf %12, %13 : vector<16x256xf32>
    %c0_12 = arith.constant 0 : index
    %c0_13 = arith.constant 0 : index
    %15 = vector.load %arg9[%c0_12, %c0_13] : memref<256x256xf32, #tpu.memory_space<vmem>>, vector<256x256xf32>
    %cst_14 = arith.constant dense<0.000000e+00> : vector<16x256xf32>
    %16 = tpu.matmul %14, %15, %cst_14 {dimension_numbers = #tpu.dot_dimension_numbers<[1], [0], [0], [1], [0, 0, 1, 1], [], []>} : vector<16x256xf32>, vector<256x256xf32>, vector<16x256xf32> -> vector<16x256xf32>
    %c0_15 = arith.constant 0 : index
    %c0_16 = arith.constant 0 : index
    %17 = vector.load %arg10[%c0_15, %c0_16] : memref<1x256xf32, #tpu.memory_space<vmem>>, vector<1x256xf32>
    %18 = vector.broadcast %17 : vector<1x256xf32> to vector<16x256xf32>
    %19 = arith.addf %16, %18 : vector<16x256xf32>
    %20 = vector.extract_strided_slice %19 {offsets = [0, 0], sizes = [16, 128], strides = [1, 1]} : vector<16x256xf32> to vector<16x128xf32>
    %c0_17 = arith.constant 0 : index
    %c0_18 = arith.constant 0 : index
    %21 = memref.load %arg4[%c0_17, %c0_18] : memref<1x1xf32, #tpu.memory_space<smem>>
    %22 = vector.extract_strided_slice %19 {offsets = [0, 128], sizes = [16, 128], strides = [1, 1]} : vector<16x256xf32> to vector<16x128xf32>
    %23 = math.tanh %22 : vector<16x128xf32>
    %24 = vector.broadcast %21 : f32 to vector<16x128xf32>
    %25 = arith.mulf %24, %23 : vector<16x128xf32>
    %26 = math.exp %25 : vector<16x128xf32>
    %27 = arith.mulf %0, %26 : vector<16x128xf32>
    %28 = arith.addf %27, %20 : vector<16x128xf32>
    %c0_19 = arith.constant 0 : index
    %c0_20 = arith.constant 0 : index
    %29 = vector.load %arg2[%c0_19, %c0_20] : memref<1x128xf32, #tpu.memory_space<vmem>>, vector<1x128xf32>
    %cst_21 = arith.constant 5.000000e-01 : f32
    %30 = vector.broadcast %cst_21 : f32 to vector<1x128xf32>
    %31 = arith.cmpf ogt, %29, %30 : vector<1x128xf32>
    %32 = vector.shape_cast %31 : vector<1x128xi1> to vector<1x128xi1>
    %33 = vector.broadcast %32 : vector<1x128xi1> to vector<16x128xi1>
    %34 = arith.select %33, %0, %28 : vector<16x128xi1>, vector<16x128xf32>
    %c0_22 = arith.constant 0 : index
    %c0_23 = arith.constant 0 : index
    %35 = vector.load %arg3[%c0_22, %c0_23] : memref<128x8xf32, #tpu.memory_space<vmem>>, vector<128x8xf32>
    %cst_24 = arith.constant dense<0.000000e+00> : vector<16x8xf32>
    %36 = tpu.matmul %25, %35, %cst_24 {dimension_numbers = #tpu.dot_dimension_numbers<[1], [0], [0], [1], [0, 0, 1, 1], [], []>} : vector<16x128xf32>, vector<128x8xf32>, vector<16x8xf32> -> vector<16x8xf32>
    %c0_25 = arith.constant 0 : index
    %c0_26 = arith.constant 0 : index
    %37 = vector.load %arg11[%c0_25, %c0_26] : memref<16x128xf32, #tpu.memory_space<vmem>>, vector<16x128xf32>
    tpu.vector_store %arg11[%c0_25, %c0_26], %34 {strides = array<i32>} : memref<16x128xf32, #tpu.memory_space<vmem>>, vector<16x128xf32>,
    %c0_27 = arith.constant 0 : index
    %c0_28 = arith.constant 0 : index
    %38 = vector.load %arg12[%c0_27, %c0_28] : memref<16x8xf32, #tpu.memory_space<vmem>>, vector<16x8xf32>
    tpu.vector_store %arg12[%c0_27, %c0_28], %36 {strides = array<i32>} : memref<16x8xf32, #tpu.memory_space<vmem>>, vector<16x8xf32>,
    return
  }
  func.func @transform_0(%arg0: i32) -> (i32, i32) {
    %c0_i32 = arith.constant 0 : i32
    %c0_i32_0 = arith.constant 0 : i32
    return %arg0, %c0_i32 : i32, i32
  }
  func.func @transform_1(%arg0: i32) -> (i32, i32) {
    %c0_i32 = arith.constant 0 : i32
    %c0_i32_0 = arith.constant 0 : i32
    %c0_i32_1 = arith.constant 0 : i32
    return %c0_i32, %c0_i32_0 : i32, i32
  }
  func.func @transform_2(%arg0: i32) -> (i32, i32) {
    %c0_i32 = arith.constant 0 : i32
    %c0_i32_0 = arith.constant 0 : i32
    %c0_i32_1 = arith.constant 0 : i32
    return %c0_i32, %c0_i32_0 : i32, i32
  }
  func.func @transform_3(%arg0: i32) -> (i32, i32) {
    %c0_i32 = arith.constant 0 : i32
    %c0_i32_0 = arith.constant 0 : i32
    %c0_i32_1 = arith.constant 0 : i32
    return %c0_i32, %c0_i32_0 : i32, i32
  }
  func.func @transform_4(%arg0: i32) -> (i32, i32) {
    %c0_i32 = arith.constant 0 : i32
    %c0_i32_0 = arith.constant 0 : i32
    %c0_i32_1 = arith.constant 0 : i32
    return %c0_i32, %c0_i32_0 : i32, i32
  }
  func.func @transform_5(%arg0: i32) -> (i32, i32) {
    %c0_i32 = arith.constant 0 : i32
    %c0_i32_0 = arith.constant 0 : i32
    %c0_i32_1 = arith.constant 0 : i32
    return %c0_i32, %c0_i32_0 : i32, i32
  }
  func.func @transform_6(%arg0: i32) -> (i32, i32) {
    %c0_i32 = arith.constant 0 : i32
    %c0_i32_0 = arith.constant 0 : i32
    %c0_i32_1 = arith.constant 0 : i32
    return %c0_i32, %c0_i32_0 : i32, i32
  }
  func.func @transform_7(%arg0: i32) -> (i32, i32) {
    %c0_i32 = arith.constant 0 : i32
    %c0_i32_0 = arith.constant 0 : i32
    %c0_i32_1 = arith.constant 0 : i32
    return %c0_i32, %c0_i32_0 : i32, i32
  }
  func.func @transform_8(%arg0: i32) -> (i32, i32) {
    %c0_i32 = arith.constant 0 : i32
    %c0_i32_0 = arith.constant 0 : i32
    %c0_i32_1 = arith.constant 0 : i32
    return %c0_i32, %c0_i32_0 : i32, i32
  }
  func.func @transform_9(%arg0: i32) -> (i32, i32) {
    %c0_i32 = arith.constant 0 : i32
    %c0_i32_0 = arith.constant 0 : i32
    %c0_i32_1 = arith.constant 0 : i32
    return %c0_i32, %c0_i32_0 : i32, i32
  }
  func.func @transform_10(%arg0: i32) -> (i32, i32) {
    %c0_i32 = arith.constant 0 : i32
    %c0_i32_0 = arith.constant 0 : i32
    return %arg0, %c0_i32 : i32, i32
  }
  func.func @transform_11(%arg0: i32) -> (i32, i32) {
    %c0_i32 = arith.constant 0 : i32
    %c0_i32_0 = arith.constant 0 : i32
    return %arg0, %c0_i32 : i32, i32
  }
}

</mosaic_0001>

<llo_original>
// kernel: tpu_custom_call.1
$region0: #{tpu_custom_call.1}
  #allocation0 [shape = 'u32[]', space=smem, size = 0x4, offset = 0x4, fixed_abs, tag = 'smem constant byte address 0x4 - core index']
  #allocation1 [shape = 'u32[144,128]{1,0:T(1,128)}', space=vmem, size = 0x12000, scoped, tag = 'internal scratch']
  #allocation2 [shape = 'f32[1,1]{1,0:T(1,128)S(6)}', space=smem, size = 0x200, scoped, tag = 'scoped memory for tpu_custom_call.1']
  %s0 = inlined_call_operand.vmem [shape: f32[32,128], index: 0, kind: input, shape index: {}]
  %s1 = inlined_call_operand.vmem [shape: f32[1,128], index: 1, kind: input, shape index: {}]
  %s2 = inlined_call_operand.vmem [shape: f32[128,8], index: 2, kind: input, shape index: {}]
  %s3 = inlined_call_operand.<no memory space> [shape: f32[1,1], index: 3, kind: input, shape index: {}]
  %s4 = inlined_call_operand.hbm [shape: f32[128,256], index: 4, kind: input, shape index: {}]
  %s5 = inlined_call_operand.vmem [shape: f32[1,256], index: 5, kind: input, shape index: {}]
  %s6 = inlined_call_operand.hbm [shape: f32[256,256], index: 6, kind: input, shape index: {}]
  %s7 = inlined_call_operand.vmem [shape: f32[1,256], index: 7, kind: input, shape index: {}]
  %s8 = inlined_call_operand.hbm [shape: f32[256,256], index: 8, kind: input, shape index: {}]
  %s9 = inlined_call_operand.vmem [shape: f32[1,256], index: 9, kind: input, shape index: {}]
  %s10 = inlined_call_operand.hbm [shape: f32[32,128], index: 10, kind: output, shape index: {0}]
  %s11 = inlined_call_operand.vmem [shape: f32[32,8], index: 11, kind: output, shape index: {1}]
  %12 = xla_tuple %s10, %s11
  %s13 = sld [smem:[#allocation0]]
  $region93: #{tpu_custom_call.1} parent=0
    _
  %s15 = ssub.s32 1, %s13
  %s16 = scalar_select 0, %s15, %s13
  %17 = sst [smem:[#allocation2]] %s3
  $region1: #{tpu_custom_call.1} parent=0
    #allocation3 [shape = 'u8[131072]{0}', space=vmem, size = 0x20000, scoped, tag = 'input window, operand 4, single buffered']
    #allocation4 [shape = 's32[2]{0}', space=sflag, size = 0x8, scoped, tag = 'scoped memory for tpu_custom_call.1']
    #allocation5 [shape = 's32[2]{0}', space=sflag, size = 0x8, scoped, tag = 'scoped memory for tpu_custom_call.1']
    #allocation6 [shape = 'u8[262144]{0}', space=vmem, size = 0x40000, scoped, tag = 'input window, operand 6, single buffered']
    #allocation7 [shape = 's32[1]{0}', space=sflag, size = 0x4, scoped, tag = 'scoped memory for tpu_custom_call.1']
    #allocation8 [shape = 'u8[262144]{0}', space=vmem, size = 0x40000, scoped, tag = 'input window, operand 8, single buffered']
    #allocation9 [shape = 'u8[16384]{0}', space=vmem, size = 0x4000, scoped, tag = 'output window, operand 0']
    %18 = vsyncpa [#allocation4], 0
    %19 = vsyncpa [#allocation7], 0
    %20 = vsyncpa [#allocation5], 0
    %s21 = scalar_lea.sflag [#allocation5], 1
    %22 = vsyncpa %s21, 0
    loop: start=0, step=1, limit=4
    $region2: #{tpu_custom_call.1} parent=1 // loop_pre_header
      _
    $region3: #{tpu_custom_call.1} parent=1 // loop_header
      %s24 = sphi 0, %s28
      %p25 = scmp.ge.s32.totalorder %s24, 4
      %s34 = sphi 0, %s36
      %s37 = sphi 0, %s34
      %s38 = sphi 0, %s37
      %s54 = sphi 0, %s38
      %s58 = sphi 0, %s58
      %s60 = sphi 0, %s58
      %s61 = sphi 0, %s60
      %s75 = sphi 0, %s61
      %s79 = sphi 0, %s79
      %s81 = sphi 0, %s79
      %s82 = sphi 0, %s81
      %s96 = sphi 0, %s82
      %s100 = sphi 0, %s100
      %s102 = sphi 0, %s100
      %s103 = sphi 0, %s102
      %s117 = sphi 0, %s103
      %s121 = sphi 0, %s121
      %s123 = sphi 0, %s121
      %s124 = sphi 0, %s123
      %s138 = sphi 0, %s124
      %s142 = sphi 0, %s142
      %s144 = sphi 0, %s142
      %s145 = sphi 0, %s144
      %s159 = sphi 0, %s145
      %s163 = sphi 0, %s163
      %s165 = sphi 0, %s163
      %s166 = sphi 0, %s165
      %s180 = sphi 0, %s166
      %s184 = sphi 0, %s184
      %s186 = sphi 0, %s184
      %s187 = sphi 0, %s186
      %s201 = sphi 0, %s187
      %s205 = sphi 0, %s205
      %s207 = sphi 0, %s205
      %s208 = sphi 0, %s207
      %s222 = sphi 0, %s208
      %s226 = sphi 0, %s226
      %s228 = sphi 0, %s226
      %s229 = sphi 0, %s228
      %s243 = sphi 0, %s229
      %s249 = sphi 0, %s251
      %s252 = sphi 0, %s249
      %s253 = sphi 0, %s252
      %s269 = sphi 0, %s253
      %s275 = sphi 0, %s277
      %s278 = sphi 0, %s275
      %s279 = sphi 0, %s278
      %s295 = sphi 0, %s279
    $region4: #{tpu_custom_call.1} parent=1 // loop_header_branch
      %27 = sbr.rel (%p25) target = $region8
    $region5: #{tpu_custom_call.1} parent=1 // loop_body
      %s29 = ssub.s32 %s24, 1
      %s30 = ssub.s32 %s24, 2
      %s31 = sadd.s32 %s24, 1
      %s32 = ssub.s32 %s24, %s31
      %p33 = scmp.eq.s32.totalorder %s32, 0
      %s35 = sadd.s32 %s34, 1
      %s36 = scalar_select %p33, %s34, %s35
      %p39 = pneg %p33
      %p40 = scmp.eq.s32.totalorder %s24, 1
      %p41 = por %p39, %p40
      %p42 = scmp.ne.s32.totalorder %s34, %s37
      %p43 = scmp.eq.s32.totalorder %s24, 0
      %p44 = por %p42, %p43
      %p45 = scmp.ne.s32.totalorder %s34, %s37
      %p46 = scmp.eq.s32.totalorder %s29, 1
      %p47 = por %p45, %p46
      %p48 = scmp.ne.s32.totalorder %s37, %s38
      %p49 = scmp.eq.s32.totalorder %s29, 0
      %p50 = por %p48, %p49
      %p51 = scmp.ne.s32.totalorder %s37, %s38
      %p52 = scmp.eq.s32.totalorder %s30, 1
      %p53 = por %p51, %p52
      %p55 = scmp.ne.s32.totalorder %s38, %s54
      %p56 = scmp.eq.s32.totalorder %s30, 0
      %p57 = por %p55, %p56
      %s59 = sadd.s32 %s58, 1
      %p62 = scmp.eq.s32.totalorder %s24, 1
      %p63 = scmp.ne.s32.totalorder %s58, %s60
      %p64 = scmp.eq.s32.totalorder %s24, 0
      %p65 = por %p63, %p64
      %p66 = scmp.ne.s32.totalorder %s58, %s60
      %p67 = scmp.eq.s32.totalorder %s29, 1
      %p68 = por %p66, %p67
      %p69 = scmp.ne.s32.totalorder %s60, %s61
      %p70 = scmp.eq.s32.totalorder %s29, 0
      %p71 = por %p69, %p70
      %p72 = scmp.ne.s32.totalorder %s60, %s61
      %p73 = scmp.eq.s32.totalorder %s30, 1
      %p74 = por %p72, %p73
      %p76 = scmp.ne.s32.totalorder %s61, %s75
      %p77 = scmp.eq.s32.totalorder %s30, 0
      %p78 = por %p76, %p77
      %s80 = sadd.s32 %s79, 1
      %p83 = scmp.eq.s32.totalorder %s24, 1
      %p84 = scmp.ne.s32.totalorder %s79, %s81
      %p85 = scmp.eq.s32.totalorder %s24, 0
      %p86 = por %p84, %p85
      %p87 = scmp.ne.s32.totalorder %s79, %s81
      %p88 = scmp.eq.s32.totalorder %s29, 1
      %p89 = por %p87, %p88
      %p90 = scmp.ne.s32.totalorder %s81, %s82
      %p91 = scmp.eq.s32.totalorder %s29, 0
      %p92 = por %p90, %p91
      %p93 = scmp.ne.s32.totalorder %s81, %s82
      %p94 = scmp.eq.s32.totalorder %s30, 1
      %p95 = por %p93, %p94
      %p97 = scmp.ne.s32.totalorder %s82, %s96
      %p98 = scmp.eq.s32.totalorder %s30, 0
      %p99 = por %p97, %p98
      %s101 = sadd.s32 %s100, 1
      %p104 = scmp.eq.s32.totalorder %s24, 1
      %p105 = scmp.ne.s32.totalorder %s100, %s102
      %p106 = scmp.eq.s32.totalorder %s24, 0
      %p107 = por %p105, %p106
      %p108 = scmp.ne.s32.totalorder %s100, %s102
      %p109 = scmp.eq.s32.totalorder %s29, 1
      %p110 = por %p108, %p109
      %p111 = scmp.ne.s32.totalorder %s102, %s103
      %p112 = scmp.eq.s32.totalorder %s29, 0
      %p113 = por %p111, %p112
      %p114 = scmp.ne.s32.totalorder %s102, %s103
      %p115 = scmp.eq.s32.totalorder %s30, 1
      %p116 = por %p114, %p115
      %p118 = scmp.ne.s32.totalorder %s103, %s117
      %p119 = scmp.eq.s32.totalorder %s30, 0
      %p120 = por %p118, %p119
      %s122 = sadd.s32 %s121, 1
      %p125 = scmp.eq.s32.totalorder %s24, 1
      %p126 = scmp.ne.s32.totalorder %s121, %s123
      %p127 = scmp.eq.s32.totalorder %s24, 0
      %p128 = por %p126, %p127
      %p129 = scmp.ne.s32.totalorder %s121, %s123
      %p130 = scmp.eq.s32.totalorder %s29, 1
      %p131 = por %p129, %p130
      %p132 = scmp.ne.s32.totalorder %s123, %s124
      %p133 = scmp.eq.s32.totalorder %s29, 0
      %p134 = por %p132, %p133
      %p135 = scmp.ne.s32.totalorder %s123, %s124
      %p136 = scmp.eq.s32.totalorder %s30, 1
      %p137 = por %p135, %p136
      %p139 = scmp.ne.s32.totalorder %s124, %s138
      %p140 = scmp.eq.s32.totalorder %s30, 0
      %p141 = por %p139, %p140
      %s143 = sadd.s32 %s142, 1
      %p146 = scmp.eq.s32.totalorder %s24, 1
      %p147 = scmp.ne.s32.totalorder %s142, %s144
      %p148 = scmp.eq.s32.totalorder %s24, 0
      %p149 = por %p147, %p148
      %p150 = scmp.ne.s32.totalorder %s142, %s144
      %p151 = scmp.eq.s32.totalorder %s29, 1
      %p152 = por %p150, %p151
      %p153 = scmp.ne.s32.totalorder %s144, %s145
      %p154 = scmp.eq.s32.totalorder %s29, 0
      %p155 = por %p153, %p154
      %p156 = scmp.ne.s32.totalorder %s144, %s145
      %p157 = scmp.eq.s32.totalorder %s30, 1
      %p158 = por %p156, %p157
      %p160 = scmp.ne.s32.totalorder %s145, %s159
      %p161 = scmp.eq.s32.totalorder %s30, 0
      %p162 = por %p160, %p161
      %s164 = sadd.s32 %s163, 1
      %p167 = scmp.eq.s32.totalorder %s24, 1
      %p168 = scmp.ne.s32.totalorder %s163, %s165
      %p169 = scmp.eq.s32.totalorder %s24, 0
      %p170 = por %p168, %p169
      %p171 = scmp.ne.s32.totalorder %s163, %s165
      %p172 = scmp.eq.s32.totalorder %s29, 1
      %p173 = por %p171, %p172
      %p174 = scmp.ne.s32.totalorder %s165, %s166
      %p175 = scmp.eq.s32.totalorder %s29, 0
      %p176 = por %p174, %p175
      %p177 = scmp.ne.s32.totalorder %s165, %s166
      %p178 = scmp.eq.s32.totalorder %s30, 1
      %p179 = por %p177, %p178
      %p181 = scmp.ne.s32.totalorder %s166, %s180
      %p182 = scmp.eq.s32.totalorder %s30, 0
      %p183 = por %p181, %p182
      %s185 = sadd.s32 %s184, 1
      %p188 = scmp.eq.s32.totalorder %s24, 1
      %p189 = scmp.ne.s32.totalorder %s184, %s186
      %p190 = scmp.eq.s32.totalorder %s24, 0
      %p191 = por %p189, %p190
      %p192 = scmp.ne.s32.totalorder %s184, %s186
      %p193 = scmp.eq.s32.totalorder %s29, 1
      %p194 = por %p192, %p193
      %p195 = scmp.ne.s32.totalorder %s186, %s187
      %p196 = scmp.eq.s32.totalorder %s29, 0
      %p197 = por %p195, %p196
      %p198 = scmp.ne.s32.totalorder %s186, %s187
      %p199 = scmp.eq.s32.totalorder %s30, 1
      %p200 = por %p198, %p199
      %p202 = scmp.ne.s32.totalorder %s187, %s201
      %p203 = scmp.eq.s32.totalorder %s30, 0
      %p204 = por %p202, %p203
      %s206 = sadd.s32 %s205, 1
      %p209 = scmp.eq.s32.totalorder %s24, 1
      %p210 = scmp.ne.s32.totalorder %s205, %s207
      %p211 = scmp.eq.s32.totalorder %s24, 0
      %p212 = por %p210, %p211
      %p213 = scmp.ne.s32.totalorder %s205, %s207
      %p214 = scmp.eq.s32.totalorder %s29, 1
      %p215 = por %p213, %p214
      %p216 = scmp.ne.s32.totalorder %s207, %s208
      %p217 = scmp.eq.s32.totalorder %s29, 0
      %p218 = por %p216, %p217
      %p219 = scmp.ne.s32.totalorder %s207, %s208
      %p220 = scmp.eq.s32.totalorder %s30, 1
      %p221 = por %p219, %p220
      %p223 = scmp.ne.s32.totalorder %s208, %s222
      %p224 = scmp.eq.s32.totalorder %s30, 0
      %p225 = por %p223, %p224
      %s227 = sadd.s32 %s226, 1
      %p230 = scmp.eq.s32.totalorder %s24, 1
      %p231 = scmp.ne.s32.totalorder %s226, %s228
      %p232 = scmp.eq.s32.totalorder %s24, 0
      %p233 = por %p231, %p232
      %p234 = scmp.ne.s32.totalorder %s226, %s228
      %p235 = scmp.eq.s32.totalorder %s29, 1
      %p236 = por %p234, %p235
      %p237 = scmp.ne.s32.totalorder %s228, %s229
      %p238 = scmp.eq.s32.totalorder %s29, 0
      %p239 = por %p237, %p238
      %p240 = scmp.ne.s32.totalorder %s228, %s229
      %p241 = scmp.eq.s32.totalorder %s30, 1
      %p242 = por %p240, %p241
      %p244 = scmp.ne.s32.totalorder %s229, %s243
      %p245 = scmp.eq.s32.totalorder %s30, 0
      %p246 = por %p244, %p245
      %s247 = ssub.s32 %s24, %s31
      %p248 = scmp.eq.s32.totalorder %s247, 0
      %s250 = sadd.s32 %s249, 1
      %s251 = scalar_select %p248, %s249, %s250
      %p254 = pneg %p248
      %p255 = scmp.eq.s32.totalorder %s24, 1
      %p256 = por %p254, %p255
      %p257 = scmp.ne.s32.totalorder %s249, %s252
      %p258 = scmp.eq.s32.totalorder %s24, 0
      %p259 = por %p257, %p258
      %p260 = scmp.ne.s32.totalorder %s249, %s252
      %p261 = scmp.eq.s32.totalorder %s29, 1
      %p262 = por %p260, %p261
      %p263 = scmp.ne.s32.totalorder %s252, %s253
      %p264 = scmp.eq.s32.totalorder %s29, 0
      %p265 = por %p263, %p264
      %p266 = scmp.ne.s32.totalorder %s252, %s253
      %p267 = scmp.eq.s32.totalorder %s30, 1
      %p268 = por %p266, %p267
      %p270 = scmp.ne.s32.totalorder %s253, %s269
      %p271 = scmp.eq.s32.totalorder %s30, 0
      %p272 = por %p270, %p271
      %s273 = ssub.s32 %s24, %s31
      %p274 = scmp.eq.s32.totalorder %s273, 0
      %s276 = sadd.s32 %s275, 1
      %s277 = scalar_select %p274, %s275, %s276
      %p280 = pneg %p274
      %p281 = scmp.eq.s32.totalorder %s24, 1
      %p282 = por %p280, %p281
      %p283 = scmp.ne.s32.totalorder %s275, %s278
      %p284 = scmp.eq.s32.totalorder %s24, 0
      %p285 = por %p283, %p284
      %p286 = scmp.ne.s32.totalorder %s275, %s278
      %p287 = scmp.eq.s32.totalorder %s29, 1
      %p288 = por %p286, %p287
      %p289 = scmp.ne.s32.totalorder %s278, %s279
      %p290 = scmp.eq.s32.totalorder %s29, 0
      %p291 = por %p289, %p290
      %p292 = scmp.ne.s32.totalorder %s278, %s279
      %p293 = scmp.eq.s32.totalorder %s30, 1
      %p294 = por %p292, %p293
      %p296 = scmp.ne.s32.totalorder %s279, %s295
      %p297 = scmp.eq.s32.totalorder %s30, 0
      %p298 = por %p296, %p297
      %p299 = scmp.le.s32.totalorder 1, %s24
      %p300 = scmp.lt.s32.totalorder %s24, 3
      %p301 = pnand %p299, %p300
      %p302 = pneg %p301
      // Predicated region
      $region9: #{tpu_custom_call.1} parent=5 // pred_check
        _
      $region10: #{tpu_custom_call.1} parent=5 // pred_check_branch
        %304 = sbr.rel (%p301) target = $region12
      $region11: #{tpu_custom_call.1} parent=5 // pred_region
        %s305 = ssub.s32 %s24, 1
        // Predicated region
        $region13: #{tpu_custom_call.1} parent=11 // pred_check
          %p306 = pneg %p71
        $region14: #{tpu_custom_call.1} parent=11 // pred_check_branch
          %308 = sbr.rel (%p306) target = $region16
        $region15: #{tpu_custom_call.1} parent=11 // pred_region
          _
        $region16: #{tpu_custom_call.1} parent=11 // pred_fallthru
          _
        // Predicated region
        $region17: #{tpu_custom_call.1} parent=11 // pred_check
          %p309 = pneg %p92
        $region18: #{tpu_custom_call.1} parent=11 // pred_check_branch
          %311 = sbr.rel (%p309) target = $region20
        $region19: #{tpu_custom_call.1} parent=11 // pred_region
          _
        $region20: #{tpu_custom_call.1} parent=11 // pred_fallthru
          _
        // Predicated region
        $region21: #{tpu_custom_call.1} parent=11 // pred_check
          %p312 = pneg %p113
        $region22: #{tpu_custom_call.1} parent=11 // pred_check_branch
          %314 = sbr.rel (%p312) target = $region24
        $region23: #{tpu_custom_call.1} parent=11 // pred_region
          _
        $region24: #{tpu_custom_call.1} parent=11 // pred_fallthru
          _
        // Predicated region
        $region25: #{tpu_custom_call.1} parent=11 // pred_check
          %p315 = pneg %p134
        $region26: #{tpu_custom_call.1} parent=11 // pred_check_branch
          %317 = sbr.rel (%p315) target = $region28
        $region27: #{tpu_custom_call.1} parent=11 // pred_region
          %s319 = ssub.s32 4096, 4096
          %320 = vsyncadd [#allocation4], %s319
          %s321 = sshll.u32 [#allocation3], 4
          %s322 = int_to_ptr.vmem [resolvable:$true] %s321
          %327 = dma.hbm_to_vmem [thread:$0]  %s4, 4096, %s322, [#allocation4], 256, 256, 16
        $region28: #{tpu_custom_call.1} parent=11 // pred_fallthru
          _
        // Predicated region
        $region29: #{tpu_custom_call.1} parent=11 // pred_check
          %p328 = pneg %p155
        $region30: #{tpu_custom_call.1} parent=11 // pred_check_branch
          %330 = sbr.rel (%p328) target = $region32
        $region31: #{tpu_custom_call.1} parent=11 // pred_region
          _
        $region32: #{tpu_custom_call.1} parent=11 // pred_fallthru
          _
        // Predicated region
        $region33: #{tpu_custom_call.1} parent=11 // pred_check
          %p331 = pneg %p176
        $region34: #{tpu_custom_call.1} parent=11 // pred_check_branch
          %333 = sbr.rel (%p331) target = $region36
        $region35: #{tpu_custom_call.1} parent=11 // pred_region
          %s335 = ssub.s32 8192, 8192
          %336 = vsyncadd [#allocation7], %s335
          %s337 = sshll.u32 [#allocation6], 4
          %s338 = int_to_ptr.vmem [resolvable:$true] %s337
          %343 = dma.hbm_to_vmem [thread:$0]  %s6, 8192, %s338, [#allocation7], 256, 256, 16
        $region36: #{tpu_custom_call.1} parent=11 // pred_fallthru
          _
        // Predicated region
        $region37: #{tpu_custom_call.1} parent=11 // pred_check
          %p344 = pneg %p197
        $region38: #{tpu_custom_call.1} parent=11 // pred_check_branch
          %346 = sbr.rel (%p344) target = $region40
        $region39: #{tpu_custom_call.1} parent=11 // pred_region
          _
        $region40: #{tpu_custom_call.1} parent=11 // pred_fallthru
          _
        // Predicated region
        $region41: #{tpu_custom_call.1} parent=11 // pred_check
          %p347 = pneg %p218
        $region42: #{tpu_custom_call.1} parent=11 // pred_check_branch
          %349 = sbr.rel (%p347) target = $region44
        $region43: #{tpu_custom_call.1} parent=11 // pred_region
          %s351 = ssub.s32 8192, 8192
          %352 = vsyncadd [#allocation7], %s351
          %s353 = sshll.u32 [#allocation8], 4
          %s354 = int_to_ptr.vmem [resolvable:$true] %s353
          %359 = dma.hbm_to_vmem [thread:$0]  %s8, 8192, %s354, [#allocation7], 256, 256, 16
        $region44: #{tpu_custom_call.1} parent=11 // pred_fallthru
          _
        // Predicated region
        $region45: #{tpu_custom_call.1} parent=11 // pred_check
          %p360 = pneg %p239
        $region46: #{tpu_custom_call.1} parent=11 // pred_check_branch
          %362 = sbr.rel (%p360) target = $region48
        $region47: #{tpu_custom_call.1} parent=11 // pred_region
          _
        $region48: #{tpu_custom_call.1} parent=11 // pred_fallthru
          _
      $region12: #{tpu_custom_call.1} parent=5 // pred_fallthru
        _
      %p363 = scmp.lt.s32.totalorder %s24, 2
      // Predicated region
      $region49: #{tpu_custom_call.1} parent=5 // pred_check
        %p364 = pneg %p363
      $region50: #{tpu_custom_call.1} parent=5 // pred_check_branch
        %366 = sbr.rel (%p364) target = $region52
      $region51: #{tpu_custom_call.1} parent=5 // pred_region
        // Predicated region
        $region53: #{tpu_custom_call.1} parent=51 // pred_check
          %p367 = pneg %p44
        $region54: #{tpu_custom_call.1} parent=51 // pred_check_branch
          %369 = sbr.rel (%p367) target = $region56
        $region55: #{tpu_custom_call.1} parent=51 // pred_region
          %s370 = smul.u32 2, %s24
          %p371 = scmp.lt.s32.totalorder %s370, 3
          %s372 = scalar_select %p371, %s370, 3
          %s373 = smul.addr %s372, 8
          %s374 = scalar_lea.vmem %s0, %s373
          %s375 = smul.u32 2, %s24
        $region56: #{tpu_custom_call.1} parent=51 // pred_fallthru
          _
      $region52: #{tpu_custom_call.1} parent=5 // pred_fallthru
        _
      %p376 = scmp.le.s32.totalorder 1, %s24
      %p377 = scmp.lt.s32.totalorder %s24, 3
      %p378 = pnand %p376, %p377
      %p379 = pneg %p378
      // Predicated region
      $region57: #{tpu_custom_call.1} parent=5 // pred_check
        _
      $region58: #{tpu_custom_call.1} parent=5 // pred_check_branch
        %381 = sbr.rel (%p378) target = $region60
      $region59: #{tpu_custom_call.1} parent=5 // pred_region
        %s382 = ssub.s32 %s24, 1
        // Predicated region
        $region61: #{tpu_custom_call.1} parent=59 // pred_check
          %p383 = pneg %p134
        $region62: #{tpu_custom_call.1} parent=59 // pred_check_branch
          %385 = sbr.rel (%p383) target = $region64
        $region63: #{tpu_custom_call.1} parent=59 // pred_region
          %386 = dma.done [#allocation4], 4096
        $region64: #{tpu_custom_call.1} parent=59 // pred_fallthru
          _
        // Predicated region
        $region65: #{tpu_custom_call.1} parent=59 // pred_check
          %p387 = pneg %p176
        $region66: #{tpu_custom_call.1} parent=59 // pred_check_branch
          %389 = sbr.rel (%p387) target = $region68
        $region67: #{tpu_custom_call.1} parent=59 // pred_region
          %390 = dma.done [#allocation7], 8192
        $region68: #{tpu_custom_call.1} parent=59 // pred_fallthru
          _
        // Predicated region
        $region69: #{tpu_custom_call.1} parent=59 // pred_check
          %p391 = pneg %p218
        $region70: #{tpu_custom_call.1} parent=59 // pred_check_branch
          %393 = sbr.rel (%p391) target = $region72
        $region71: #{tpu_custom_call.1} parent=59 // pred_region
          %394 = dma.done [#allocation7], 8192
        $region72: #{tpu_custom_call.1} parent=59 // pred_fallthru
          _
        %s395 = smul.u32 2, %s29
        %p396 = scmp.lt.s32.totalorder %s395, 3
        %s397 = scalar_select %p396, %s395, 3
        %s398 = smul.addr %s397, 8
        %s399 = scalar_lea.vmem %s0, %s398
        %p400 = pneg %p50
        %p401 = pneg %p47
        %p402 = pneg %p71
        %p403 = pneg %p68
        %p404 = pneg %p92
        %p405 = pneg %p89
        %p406 = pneg %p113
        %p407 = pneg %p110
        %p408 = pneg %p134
        %p409 = pneg %p131
        %p410 = pneg %p155
        %p411 = pneg %p152
        %p412 = pneg %p176
        %p413 = pneg %p173
        %p414 = pneg %p197
        %p415 = pneg %p194
        %p416 = pneg %p218
        %p417 = pneg %p215
        %p418 = pneg %p239
        %p419 = pneg %p236
        %p420 = pneg %p265
        %p421 = pneg %p262
        %s422 = sand.u32 %s252, 1
        %s423 = scalar_lea.sflag [#allocation5], %s422
        %s424 = sand.u32 %s252, 1
        %s425 = smul.addr %s424, 16
        %s426 = scalar_lea.vmem [#allocation9], %s425
        %p427 = pneg %p291
        %p428 = pneg %p288
        %s429 = smul.u32 2, %s29
        %p430 = scmp.lt.s32.totalorder %s429, 3
        %s431 = scalar_select %p430, %s429, 3
        %s432 = smul.addr %s431, 8
        %s433 = scalar_lea.vmem %s11, %s432
        %s434 = smul.u32 2, %s29
        %p435 = scmp.lt.s32.totalorder %s434, 3
        %s436 = scalar_select %p435, %s434, 3
        %s437 = smul.addr %s436, 8
        %s438 = scalar_lea.vmem %s0, %s437
        %s439 = smul.u32 2, %s29
        %s440 = smul.u32 2, %s29
        %s441 = smul.u32 2, %s29
        %p442 = scmp.lt.s32.totalorder %s441, 3
        %s443 = scalar_select %p442, %s441, 3
        %s444 = smul.addr %s443, 8
        %s445 = scalar_lea.vmem %s11, %s444
        %s446 = smul.u32 2, %s29
        %v447 = vld [vmem:[%s438] sm:$0xff]
        %v448 = vld [vmem:[%s438 + $0x8] sm:$0xff]
        %v449 = vld [vmem:[#allocation3] sm:$0xff]
        %v450 = vld [vmem:[#allocation3 + $0x8] sm:$0xff]
        %v451 = vld [vmem:[#allocation3 + $0x10] sm:$0xff]
        %v452 = vld [vmem:[#allocation3 + $0x18] sm:$0xff]
        %v453 = vld [vmem:[#allocation3 + $0x20] sm:$0xff]
        %v454 = vld [vmem:[#allocation3 + $0x28] sm:$0xff]
        %v455 = vld [vmem:[#allocation3 + $0x30] sm:$0xff]
        %v456 = vld [vmem:[#allocation3 + $0x38] sm:$0xff]
        %v457 = vld [vmem:[#allocation3 + $0x40] sm:$0xff]
        %v458 = vld [vmem:[#allocation3 + $0x48] sm:$0xff]
        %v459 = vld [vmem:[#allocation3 + $0x50] sm:$0xff]
        %v460 = vld [vmem:[#allocation3 + $0x58] sm:$0xff]
        %v461 = vld [vmem:[#allocation3 + $0x60] sm:$0xff]
        %v462 = vld [vmem:[#allocation3 + $0x68] sm:$0xff]
        %v463 = vld [vmem:[#allocation3 + $0x70] sm:$0xff]
        %v464 = vld [vmem:[#allocation3 + $0x78] sm:$0xff]
        %v465 = vld [vmem:[#allocation3 + $0x80] sm:$0xff]
        %v466 = vld [vmem:[#allocation3 + $0x88] sm:$0xff]
        %v467 = vld [vmem:[#allocation3 + $0x90] sm:$0xff]
        %v468 = vld [vmem:[#allocation3 + $0x98] sm:$0xff]
        %v469 = vld [vmem:[#allocation3 + $0xa0] sm:$0xff]
        %v470 = vld [vmem:[#allocation3 + $0xa8] sm:$0xff]
        %v471 = vld [vmem:[#allocation3 + $0xb0] sm:$0xff]
        %v472 = vld [vmem:[#allocation3 + $0xb8] sm:$0xff]
        %v473 = vld [vmem:[#allocation3 + $0xc0] sm:$0xff]
        %v474 = vld [vmem:[#allocation3 + $0xc8] sm:$0xff]
        %v475 = vld [vmem:[#allocation3 + $0xd0] sm:$0xff]
        %v476 = vld [vmem:[#allocation3 + $0xd8] sm:$0xff]
        %v477 = vld [vmem:[#allocation3 + $0xe0] sm:$0xff]
        %v478 = vld [vmem:[#allocation3 + $0xe8] sm:$0xff]
        %v479 = vld [vmem:[#allocation3 + $0xf0] sm:$0xff]
        %v480 = vld [vmem:[#allocation3 + $0xf8] sm:$0xff]
        %v481 = vld [vmem:[%s5] sm:$0x3]
        %v483 = vlaneseq
        %v484 = vshrl.u32 %v483, 7
        %v485 = vsub.s32 0, %v484
        %v486 = vrot.slane %v481, %v485
        %v487 = vlaneseq
        %v488 = vshrl.u32 %v487, 7
        %v489 = vsub.s32 1, %v488
        %v490 = vrot.slane %v481, %v489
        %493 = vmatprep.subr.mxu0 %v450
        %494 = vmatpush1.msra.mxu0 %v449
        %495 = vmatprep.subr.mxu0 %v452
        %496 = vmatpush1.msra.mxu0 %v451
        %497 = vmatprep.subr.mxu0 %v454
        %498 = vmatpush1.msra.mxu0 %v453
        %499 = vmatprep.subr.mxu0 %v456
        %500 = vmatpush1.msra.mxu0 %v455
        %501 = vmatprep.subr.mxu0 %v458
        %502 = vmatpush1.msra.mxu0 %v457
        %503 = vmatprep.subr.mxu0 %v460
        %504 = vmatpush1.msra.mxu0 %v459
        %505 = vmatprep.subr.mxu0 %v462
        %506 = vmatpush1.msra.mxu0 %v461
        %507 = vmatprep.subr.mxu0 %v464
        %508 = vmatpush1.msra.mxu0 %v463
        %509 = vmatprep.subr.mxu0 %v466
        %510 = vmatpush1.msra.mxu0 %v465
        %511 = vmatprep.subr.mxu0 %v468
        %512 = vmatpush1.msra.mxu0 %v467
        %513 = vmatprep.subr.mxu0 %v470
        %514 = vmatpush1.msra.mxu0 %v469
        %515 = vmatprep.subr.mxu0 %v472
        %516 = vmatpush1.msra.mxu0 %v471
        %517 = vmatprep.subr.mxu0 %v474
        %518 = vmatpush1.msra.mxu0 %v473
        %519 = vmatprep.subr.mxu0 %v476
        %520 = vmatpush1.msra.mxu0 %v475
        %521 = vmatprep.subr.mxu0 %v478
        %522 = vmatpush1.msra.mxu0 %v477
        %523 = vmatprep.subr.mxu0 %v480
        %524 = vmatpush1.msra.mxu0 %v479
        %525 = vmatprep.subr.mxu0 0.0
        %526 = vmatpush1.msra.mxu0 0.0
        %527 = vmatprep.subr.mxu0 0.0
        %528 = vmatpush1.msra.mxu0 0.0
        %529 = vmatprep.subr.mxu0 0.0
        %530 = vmatpush1.msra.mxu0 0.0
        %531 = vmatprep.subr.mxu0 0.0
        %532 = vmatpush1.msra.mxu0 0.0
        %533 = vmatprep.subr.mxu0 0.0
        %534 = vmatpush1.msra.mxu0 0.0
        %535 = vmatprep.subr.mxu0 0.0
        %536 = vmatpush1.msra.mxu0 0.0
        %537 = vmatprep.subr.mxu0 0.0
        %538 = vmatpush1.msra.mxu0 0.0
        %539 = vmatprep.subr.mxu0 0.0
        %540 = vmatpush1.msra.mxu0 0.0
        %541 = vmatprep.subr.mxu0 0.0
        %542 = vmatpush1.msra.mxu0 0.0
        %543 = vmatprep.subr.mxu0 0.0
        %544 = vmatpush1.msra.mxu0 0.0
        %545 = vmatprep.subr.mxu0 0.0
        %546 = vmatpush1.msra.mxu0 0.0
        %547 = vmatprep.subr.mxu0 0.0
        %548 = vmatpush1.msra.mxu0 0.0
        %549 = vmatprep.subr.mxu0 0.0
        %550 = vmatpush1.msra.mxu0 0.0
        %551 = vmatprep.subr.mxu0 0.0
        %552 = vmatpush1.msra.mxu0 0.0
        %553 = vmatprep.subr.mxu0 0.0
        %554 = vmatpush1.msra.mxu0 0.0
        %555 = vmatprep.subr.mxu0 0.0
        %556 = vmatpush1.msra.mxu0 0.0
        %557 = vmatprep.mubr.f32.mxu0 0.0
        %558 = vmatmul.mubr.f32.gmra.mrb[0].mxu0 %v447
        %v559 = vpop.f32.mrb[0].mxu0
        %v560 = vadd.f32 %v486, %v559
        %v561 = vpop.f32.mrb[0].mxu0
        %v562 = vadd.f32 %v490, %v561
        %563 = vmatprep.mubr.f32.mxu0 0.0
        %564 = vmatmul.mubr.f32.gmra.mrb[0].mxu0 %v448
        %v565 = vpop.f32.mrb[0].mxu0
        %v566 = vadd.f32 %v486, %v565
        %v567 = vpop.f32.mrb[0].mxu0
        %v568 = vadd.f32 %v490, %v567
        %569 = vdwg.mxu0
        %v570 = vmax.f32 %v560, 0.0
        %v571 = vmax.f32 %v562, 0.0
        %v572 = vmax.f32 %v566, 0.0
        %v573 = vmax.f32 %v568, 0.0
        %v574 = vld [vmem:[#allocation6] sm:$0xff]
        %v575 = vld [vmem:[#allocation6 + $0x8] sm:$0xff]
        %v576 = vld [vmem:[#allocation6 + $0x10] sm:$0xff]
        %v577 = vld [vmem:[#allocation6 + $0x18] sm:$0xff]
        %v578 = vld [vmem:[#allocation6 + $0x20] sm:$0xff]
        %v579 = vld [vmem:[#allocation6 + $0x28] sm:$0xff]
        %v580 = vld [vmem:[#allocation6 + $0x30] sm:$0xff]
        %v581 = vld [vmem:[#allocation6 + $0x38] sm:$0xff]
        %v582 = vld [vmem:[#allocation6 + $0x40] sm:$0xff]
        %v583 = vld [vmem:[#allocation6 + $0x48] sm:$0xff]
        %v584 = vld [vmem:[#allocation6 + $0x50] sm:$0xff]
        %v585 = vld [vmem:[#allocation6 + $0x58] sm:$0xff]
        %v586 = vld [vmem:[#allocation6 + $0x60] sm:$0xff]
        %v587 = vld [vmem:[#allocation6 + $0x68] sm:$0xff]
        %v588 = vld [vmem:[#allocation6 + $0x70] sm:$0xff]
        %v589 = vld [vmem:[#allocation6 + $0x78] sm:$0xff]
        %v590 = vld [vmem:[#allocation6 + $0x80] sm:$0xff]
        %v591 = vld [vmem:[#allocation6 + $0x88] sm:$0xff]
        %v592 = vld [vmem:[#allocation6 + $0x90] sm:$0xff]
        %v593 = vld [vmem:[#allocation6 + $0x98] sm:$0xff]
        %v594 = vld [vmem:[#allocation6 + $0xa0] sm:$0xff]
        %v595 = vld [vmem:[#allocation6 + $0xa8] sm:$0xff]
        %v596 = vld [vmem:[#allocation6 + $0xb0] sm:$0xff]
        %v597 = vld [vmem:[#allocation6 + $0xb8] sm:$0xff]
        %v598 = vld [vmem:[#allocation6 + $0xc0] sm:$0xff]
        %v599 = vld [vmem:[#allocation6 + $0xc8] sm:$0xff]
        %v600 = vld [vmem:[#allocation6 + $0xd0] sm:$0xff]
        %v601 = vld [vmem:[#allocation6 + $0xd8] sm:$0xff]
        %v602 = vld [vmem:[#allocation6 + $0xe0] sm:$0xff]
        %v603 = vld [vmem:[#allocation6 + $0xe8] sm:$0xff]
        %v604 = vld [vmem:[#allocation6 + $0xf0] sm:$0xff]
        %v605 = vld [vmem:[#allocation6 + $0xf8] sm:$0xff]
        %v606 = vld [vmem:[#allocation6 + $0x100] sm:$0xff]
        %v607 = vld [vmem:[#allocation6 + $0x108] sm:$0xff]
        %v608 = vld [vmem:[#allocation6 + $0x110] sm:$0xff]
        %v609 = vld [vmem:[#allocation6 + $0x118] sm:$0xff]
        %v610 = vld [vmem:[#allocation6 + $0x120] sm:$0xff]
        %v611 = vld [vmem:[#allocation6 + $0x128] sm:$0xff]
        %v612 = vld [vmem:[#allocation6 + $0x130] sm:$0xff]
        %v613 = vld [vmem:[#allocation6 + $0x138] sm:$0xff]
        %v614 = vld [vmem:[#allocation6 + $0x140] sm:$0xff]
        %v615 = vld [vmem:[#allocation6 + $0x148] sm:$0xff]
        %v616 = vld [vmem:[#allocation6 + $0x150] sm:$0xff]
        %v617 = vld [vmem:[#allocation6 + $0x158] sm:$0xff]
        %v618 = vld [vmem:[#allocation6 + $0x160] sm:$0xff]
        %v619 = vld [vmem:[#allocation6 + $0x168] sm:$0xff]
        %v620 = vld [vmem:[#allocation6 + $0x170] sm:$0xff]
        %v621 = vld [vmem:[#allocation6 + $0x178] sm:$0xff]
        %v622 = vld [vmem:[#allocation6 + $0x180] sm:$0xff]
        %v623 = vld [vmem:[#allocation6 + $0x188] sm:$0xff]
        %v624 = vld [vmem:[#allocation6 + $0x190] sm:$0xff]
        %v625 = vld [vmem:[#allocation6 + $0x198] sm:$0xff]
        %v626 = vld [vmem:[#allocation6 + $0x1a0] sm:$0xff]
        %v627 = vld [vmem:[#allocation6 + $0x1a8] sm:$0xff]
        %v628 = vld [vmem:[#allocation6 + $0x1b0] sm:$0xff]
        %v629 = vld [vmem:[#allocation6 + $0x1b8] sm:$0xff]
        %v630 = vld [vmem:[#allocation6 + $0x1c0] sm:$0xff]
        %v631 = vld [vmem:[#allocation6 + $0x1c8] sm:$0xff]
        %v632 = vld [vmem:[#allocation6 + $0x1d0] sm:$0xff]
        %v633 = vld [vmem:[#allocation6 + $0x1d8] sm:$0xff]
        %v634 = vld [vmem:[#allocation6 + $0x1e0] sm:$0xff]
        %v635 = vld [vmem:[#allocation6 + $0x1e8] sm:$0xff]
        %v636 = vld [vmem:[#allocation6 + $0x1f0] sm:$0xff]
        %v637 = vld [vmem:[#allocation6 + $0x1f8] sm:$0xff]
        %v638 = vld [vmem:[%s7] sm:$0x3]
        %v640 = vlaneseq
        %v641 = vshrl.u32 %v640, 7
        %v642 = vsub.s32 0, %v641
        %v643 = vrot.slane %v638, %v642
        %v644 = vlaneseq
        %v645 = vshrl.u32 %v644, 7
        %v646 = vsub.s32 1, %v645
        %v647 = vrot.slane %v638, %v646
        %650 = vmatprep.subr.mxu0 %v575
        %651 = vmatpush1.msra.mxu0 %v574
        %652 = vmatprep.subr.mxu0 %v577
        %653 = vmatpush1.msra.mxu0 %v576
        %654 = vmatprep.subr.mxu0 %v579
        %655 = vmatpush1.msra.mxu0 %v578
        %656 = vmatprep.subr.mxu0 %v581
        %657 = vmatpush1.msra.mxu0 %v580
        %658 = vmatprep.subr.mxu0 %v583
        %659 = vmatpush1.msra.mxu0 %v582
        %660 = vmatprep.subr.mxu0 %v585
        %661 = vmatpush1.msra.mxu0 %v584
        %662 = vmatprep.subr.mxu0 %v587
        %663 = vmatpush1.msra.mxu0 %v586
        %664 = vmatprep.subr.mxu0 %v589
        %665 = vmatpush1.msra.mxu0 %v588
        %666 = vmatprep.subr.mxu0 %v591
        %667 = vmatpush1.msra.mxu0 %v590
        %668 = vmatprep.subr.mxu0 %v593
        %669 = vmatpush1.msra.mxu0 %v592
        %670 = vmatprep.subr.mxu0 %v595
        %671 = vmatpush1.msra.mxu0 %v594
        %672 = vmatprep.subr.mxu0 %v597
        %673 = vmatpush1.msra.mxu0 %v596
        %674 = vmatprep.subr.mxu0 %v599
        %675 = vmatpush1.msra.mxu0 %v598
        %676 = vmatprep.subr.mxu0 %v601
        %677 = vmatpush1.msra.mxu0 %v600
        %678 = vmatprep.subr.mxu0 %v603
        %679 = vmatpush1.msra.mxu0 %v602
        %680 = vmatprep.subr.mxu0 %v605
        %681 = vmatpush1.msra.mxu0 %v604
        %682 = vmatprep.subr.mxu0 %v607
        %683 = vmatpush1.msra.mxu0 %v606
        %684 = vmatprep.subr.mxu0 %v609
        %685 = vmatpush1.msra.mxu0 %v608
        %686 = vmatprep.subr.mxu0 %v611
        %687 = vmatpush1.msra.mxu0 %v610
        %688 = vmatprep.subr.mxu0 %v613
        %689 = vmatpush1.msra.mxu0 %v612
        %690 = vmatprep.subr.mxu0 %v615
        %691 = vmatpush1.msra.mxu0 %v614
        %692 = vmatprep.subr.mxu0 %v617
        %693 = vmatpush1.msra.mxu0 %v616
        %694 = vmatprep.subr.mxu0 %v619
        %695 = vmatpush1.msra.mxu0 %v618
        %696 = vmatprep.subr.mxu0 %v621
        %697 = vmatpush1.msra.mxu0 %v620
        %698 = vmatprep.subr.mxu0 %v623
        %699 = vmatpush1.msra.mxu0 %v622
        %700 = vmatprep.subr.mxu0 %v625
        %701 = vmatpush1.msra.mxu0 %v624
        %702 = vmatprep.subr.mxu0 %v627
        %703 = vmatpush1.msra.mxu0 %v626
        %704 = vmatprep.subr.mxu0 %v629
        %705 = vmatpush1.msra.mxu0 %v628
        %706 = vmatprep.subr.mxu0 %v631
        %707 = vmatpush1.msra.mxu0 %v630
        %708 = vmatprep.subr.mxu0 %v633
        %709 = vmatpush1.msra.mxu0 %v632
        %710 = vmatprep.subr.mxu0 %v635
        %711 = vmatpush1.msra.mxu0 %v634
        %712 = vmatprep.subr.mxu0 %v637
        %713 = vmatpush1.msra.mxu0 %v636
        %714 = vmatprep.mubr.f32.mxu0 %v571
        %715 = vmatmul.mubr.f32.gmra.mrb[0].mxu0 %v570
        %v716 = vpop.f32.mrb[0].mxu0
        %v717 = vadd.f32 %v643, %v716
        %v718 = vpop.f32.mrb[0].mxu0
        %v719 = vadd.f32 %v647, %v718
        %720 = vmatprep.mubr.f32.mxu0 %v573
        %721 = vmatmul.mubr.f32.gmra.mrb[0].mxu0 %v572
        %v722 = vpop.f32.mrb[0].mxu0
        %v723 = vadd.f32 %v643, %v722
        %v724 = vpop.f32.mrb[0].mxu0
        %v725 = vadd.f32 %v647, %v724
        %726 = vdwg.mxu0
        %v727 = vmax.f32 %v717, 0.0
        %v728 = vmax.f32 %v719, 0.0
        %v729 = vmax.f32 %v723, 0.0
        %v730 = vmax.f32 %v725, 0.0
        %v731 = vld [vmem:[#allocation8] sm:$0xff]
        %v732 = vld [vmem:[#allocation8 + $0x8] sm:$0xff]
        %v733 = vld [vmem:[#allocation8 + $0x10] sm:$0xff]
        %v734 = vld [vmem:[#allocation8 + $0x18] sm:$0xff]
        %v735 = vld [vmem:[#allocation8 + $0x20] sm:$0xff]
        %v736 = vld [vmem:[#allocation8 + $0x28] sm:$0xff]
        %v737 = vld [vmem:[#allocation8 + $0x30] sm:$0xff]
        %v738 = vld [vmem:[#allocation8 + $0x38] sm:$0xff]
        %v739 = vld [vmem:[#allocation8 + $0x40] sm:$0xff]
        %v740 = vld [vmem:[#allocation8 + $0x48] sm:$0xff]
        %v741 = vld [vmem:[#allocation8 + $0x50] sm:$0xff]
        %v742 = vld [vmem:[#allocation8 + $0x58] sm:$0xff]
        %v743 = vld [vmem:[#allocation8 + $0x60] sm:$0xff]
        %v744 = vld [vmem:[#allocation8 + $0x68] sm:$0xff]
        %v745 = vld [vmem:[#allocation8 + $0x70] sm:$0xff]
        %v746 = vld [vmem:[#allocation8 + $0x78] sm:$0xff]
        %v747 = vld [vmem:[#allocation8 + $0x80] sm:$0xff]
        %v748 = vld [vmem:[#allocation8 + $0x88] sm:$0xff]
        %v749 = vld [vmem:[#allocation8 + $0x90] sm:$0xff]
        %v750 = vld [vmem:[#allocation8 + $0x98] sm:$0xff]
        %v751 = vld [vmem:[#allocation8 + $0xa0] sm:$0xff]
        %v752 = vld [vmem:[#allocation8 + $0xa8] sm:$0xff]
        %v753 = vld [vmem:[#allocation8 + $0xb0] sm:$0xff]
        %v754 = vld [vmem:[#allocation8 + $0xb8] sm:$0xff]
        %v755 = vld [vmem:[#allocation8 + $0xc0] sm:$0xff]
        %v756 = vld [vmem:[#allocation8 + $0xc8] sm:$0xff]
        %v757 = vld [vmem:[#allocation8 + $0xd0] sm:$0xff]
        %v758 = vld [vmem:[#allocation8 + $0xd8] sm:$0xff]
        %v759 = vld [vmem:[#allocation8 + $0xe0] sm:$0xff]
        %v760 = vld [vmem:[#allocation8 + $0xe8] sm:$0xff]
        %v761 = vld [vmem:[#allocation8 + $0xf0] sm:$0xff]
        %v762 = vld [vmem:[#allocation8 + $0xf8] sm:$0xff]
        %v763 = vld [vmem:[#allocation8 + $0x100] sm:$0xff]
        %v764 = vld [vmem:[#allocation8 + $0x108] sm:$0xff]
        %v765 = vld [vmem:[#allocation8 + $0x110] sm:$0xff]
        %v766 = vld [vmem:[#allocation8 + $0x118] sm:$0xff]
        %v767 = vld [vmem:[#allocation8 + $0x120] sm:$0xff]
        %v768 = vld [vmem:[#allocation8 + $0x128] sm:$0xff]
        %v769 = vld [vmem:[#allocation8 + $0x130] sm:$0xff]
        %v770 = vld [vmem:[#allocation8 + $0x138] sm:$0xff]
        %v771 = vld [vmem:[#allocation8 + $0x140] sm:$0xff]
        %v772 = vld [vmem:[#allocation8 + $0x148] sm:$0xff]
        %v773 = vld [vmem:[#allocation8 + $0x150] sm:$0xff]
        %v774 = vld [vmem:[#allocation8 + $0x158] sm:$0xff]
        %v775 = vld [vmem:[#allocation8 + $0x160] sm:$0xff]
        %v776 = vld [vmem:[#allocation8 + $0x168] sm:$0xff]
        %v777 = vld [vmem:[#allocation8 + $0x170] sm:$0xff]
        %v778 = vld [vmem:[#allocation8 + $0x178] sm:$0xff]
        %v779 = vld [vmem:[#allocation8 + $0x180] sm:$0xff]
        %v780 = vld [vmem:[#allocation8 + $0x188] sm:$0xff]
        %v781 = vld [vmem:[#allocation8 + $0x190] sm:$0xff]
        %v782 = vld [vmem:[#allocation8 + $0x198] sm:$0xff]
        %v783 = vld [vmem:[#allocation8 + $0x1a0] sm:$0xff]
        %v784 = vld [vmem:[#allocation8 + $0x1a8] sm:$0xff]
        %v785 = vld [vmem:[#allocation8 + $0x1b0] sm:$0xff]
        %v786 = vld [vmem:[#allocation8 + $0x1b8] sm:$0xff]
        %v787 = vld [vmem:[#allocation8 + $0x1c0] sm:$0xff]
        %v788 = vld [vmem:[#allocation8 + $0x1c8] sm:$0xff]
        %v789 = vld [vmem:[#allocation8 + $0x1d0] sm:$0xff]
        %v790 = vld [vmem:[#allocation8 + $0x1d8] sm:$0xff]
        %v791 = vld [vmem:[#allocation8 + $0x1e0] sm:$0xff]
        %v792 = vld [vmem:[#allocation8 + $0x1e8] sm:$0xff]
        %v793 = vld [vmem:[#allocation8 + $0x1f0] sm:$0xff]
        %v794 = vld [vmem:[#allocation8 + $0x1f8] sm:$0xff]
        %v795 = vld [vmem:[%s9] sm:$0x3]
        %v797 = vlaneseq
        %v798 = vshrl.u32 %v797, 7
        %v799 = vsub.s32 0, %v798
        %v800 = vrot.slane %v795, %v799
        %v801 = vlaneseq
        %v802 = vshrl.u32 %v801, 7
        %v803 = vsub.s32 1, %v802
        %v804 = vrot.slane %v795, %v803
        %807 = vmatprep.subr.mxu0 %v732
        %808 = vmatpush1.msra.mxu0 %v731
        %809 = vmatprep.subr.mxu0 %v734
        %810 = vmatpush1.msra.mxu0 %v733
        %811 = vmatprep.subr.mxu0 %v736
        %812 = vmatpush1.msra.mxu0 %v735
        %813 = vmatprep.subr.mxu0 %v738
        %814 = vmatpush1.msra.mxu0 %v737
        %815 = vmatprep.subr.mxu0 %v740
        %816 = vmatpush1.msra.mxu0 %v739
        %817 = vmatprep.subr.mxu0 %v742
        %818 = vmatpush1.msra.mxu0 %v741
        %819 = vmatprep.subr.mxu0 %v744
        %820 = vmatpush1.msra.mxu0 %v743
        %821 = vmatprep.subr.mxu0 %v746
        %822 = vmatpush1.msra.mxu0 %v745
        %823 = vmatprep.subr.mxu0 %v748
        %824 = vmatpush1.msra.mxu0 %v747
        %825 = vmatprep.subr.mxu0 %v750
        %826 = vmatpush1.msra.mxu0 %v749
        %827 = vmatprep.subr.mxu0 %v752
        %828 = vmatpush1.msra.mxu0 %v751
        %829 = vmatprep.subr.mxu0 %v754
        %830 = vmatpush1.msra.mxu0 %v753
        %831 = vmatprep.subr.mxu0 %v756
        %832 = vmatpush1.msra.mxu0 %v755
        %833 = vmatprep.subr.mxu0 %v758
        %834 = vmatpush1.msra.mxu0 %v757
        %835 = vmatprep.subr.mxu0 %v760
        %836 = vmatpush1.msra.mxu0 %v759
        %837 = vmatprep.subr.mxu0 %v762
        %838 = vmatpush1.msra.mxu0 %v761
        %839 = vmatprep.subr.mxu0 %v764
        %840 = vmatpush1.msra.mxu0 %v763
        %841 = vmatprep.subr.mxu0 %v766
        %842 = vmatpush1.msra.mxu0 %v765
        %843 = vmatprep.subr.mxu0 %v768
        %844 = vmatpush1.msra.mxu0 %v767
        %845 = vmatprep.subr.mxu0 %v770
        %846 = vmatpush1.msra.mxu0 %v769
        %847 = vmatprep.subr.mxu0 %v772
        %848 = vmatpush1.msra.mxu0 %v771
        %849 = vmatprep.subr.mxu0 %v774
        %850 = vmatpush1.msra.mxu0 %v773
        %851 = vmatprep.subr.mxu0 %v776
        %852 = vmatpush1.msra.mxu0 %v775
        %853 = vmatprep.subr.mxu0 %v778
        %854 = vmatpush1.msra.mxu0 %v777
        %855 = vmatprep.subr.mxu0 %v780
        %856 = vmatpush1.msra.mxu0 %v779
        %857 = vmatprep.subr.mxu0 %v782
        %858 = vmatpush1.msra.mxu0 %v781
        %859 = vmatprep.subr.mxu0 %v784
        %860 = vmatpush1.msra.mxu0 %v783
        %861 = vmatprep.subr.mxu0 %v786
        %862 = vmatpush1.msra.mxu0 %v785
        %863 = vmatprep.subr.mxu0 %v788
        %864 = vmatpush1.msra.mxu0 %v787
        %865 = vmatprep.subr.mxu0 %v790
        %866 = vmatpush1.msra.mxu0 %v789
        %867 = vmatprep.subr.mxu0 %v792
        %868 = vmatpush1.msra.mxu0 %v791
        %869 = vmatprep.subr.mxu0 %v794
        %870 = vmatpush1.msra.mxu0 %v793
        %871 = vmatprep.mubr.f32.mxu0 %v728
        %872 = vmatmul.mubr.f32.gmra.mrb[0].mxu0 %v727
        %v873 = vpop.f32.mrb[0].mxu0
        %v874 = vadd.f32 %v800, %v873
        %v875 = vpop.f32.mrb[0].mxu0
        %v876 = vadd.f32 %v804, %v875
        %877 = vmatprep.mubr.f32.mxu0 %v730
        %878 = vmatmul.mubr.f32.gmra.mrb[0].mxu0 %v729
        %v879 = vpop.f32.mrb[0].mxu0
        %v880 = vadd.f32 %v800, %v879
        %v881 = vpop.f32.mrb[0].mxu0
        %v882 = vadd.f32 %v804, %v881
        %883 = vdwg.mxu0
        %s884 = sld [smem:[#allocation2]]
        %v885 = vtanh.pop %v876
        %v886 = vtanh.pop %v882
        %v887 = vstv %s884
        %v888 = vmul.f32 %v887, %v885
        %v889 = vmul.f32 %v887, %v886
        %v890 = vmul.f32 %v888, 1.442695
        %v891 = vpow.pop %v890
        %v892 = vmul.f32 %v889, 1.442695
        %v893 = vpow.pop %v892
        %v894 = vmul.f32 %v447, %v891
        %v895 = vmul.f32 %v448, %v893
        %v896 = vadd.f32 %v894, %v874
        %v897 = vadd.f32 %v895, %v880
        %v898 = vld [vmem:[%s1] sm:$0x1]
        %vm899 = vcmp.gt.f32.partialorder %v898, 0.5
        %v900 = vsel %vm899, 1, 0
        %v901 = vlaneseq
        %v902 = vshrl.u32 %v901, 7
        %v903 = vsub.s32 0, %v902
        %v904 = vrot.slane %v900, %v903
        %vm905 = vcmp.eq.s32.totalorder %v904, 1
        %v906 = vsel %vm905, %v447, %v896
        %v907 = vsel %vm905, %v448, %v897
        %v908 = vld [vmem:[%s2] sm:$0xff]
        %v909 = vld [vmem:[%s2 + $0x8] sm:$0xff]
        %v910 = vld [vmem:[%s2 + $0x10] sm:$0xff]
        %v911 = vld [vmem:[%s2 + $0x18] sm:$0xff]
        %v912 = vld [vmem:[%s2 + $0x20] sm:$0xff]
        %v913 = vld [vmem:[%s2 + $0x28] sm:$0xff]
        %v914 = vld [vmem:[%s2 + $0x30] sm:$0xff]
        %v915 = vld [vmem:[%s2 + $0x38] sm:$0xff]
        %v916 = vld [vmem:[%s2 + $0x40] sm:$0xff]
        %v917 = vld [vmem:[%s2 + $0x48] sm:$0xff]
        %v918 = vld [vmem:[%s2 + $0x50] sm:$0xff]
        %v919 = vld [vmem:[%s2 + $0x58] sm:$0xff]
        %v920 = vld [vmem:[%s2 + $0x60] sm:$0xff]
        %v921 = vld [vmem:[%s2 + $0x68] sm:$0xff]
        %v922 = vld [vmem:[%s2 + $0x70] sm:$0xff]
        %v923 = vld [vmem:[%s2 + $0x78] sm:$0xff]
        %924 = vmatprep.subr.mxu0 0.0
        %925 = vmatpush1.msra.mxu0 %v908
        %926 = vmatprep.subr.mxu0 0.0
        %927 = vmatpush1.msra.mxu0 %v909
        %928 = vmatprep.subr.mxu0 0.0
        %929 = vmatpush1.msra.mxu0 %v910
        %930 = vmatprep.subr.mxu0 0.0
        %931 = vmatpush1.msra.mxu0 %v911
        %932 = vmatprep.subr.mxu0 0.0
        %933 = vmatpush1.msra.mxu0 %v912
        %934 = vmatprep.subr.mxu0 0.0
        %935 = vmatpush1.msra.mxu0 %v913
        %936 = vmatprep.subr.mxu0 0.0
        %937 = vmatpush1.msra.mxu0 %v914
        %938 = vmatprep.subr.mxu0 0.0
        %939 = vmatpush1.msra.mxu0 %v915
        %940 = vmatprep.subr.mxu0 0.0
        %941 = vmatpush1.msra.mxu0 %v916
        %942 = vmatprep.subr.mxu0 0.0
        %943 = vmatpush1.msra.mxu0 %v917
        %944 = vmatprep.subr.mxu0 0.0
        %945 = vmatpush1.msra.mxu0 %v918
        %946 = vmatprep.subr.mxu0 0.0
        %947 = vmatpush1.msra.mxu0 %v919
        %948 = vmatprep.subr.mxu0 0.0
        %949 = vmatpush1.msra.mxu0 %v920
        %950 = vmatprep.subr.mxu0 0.0
        %951 = vmatpush1.msra.mxu0 %v921
        %952 = vmatprep.subr.mxu0 0.0
        %953 = vmatpush1.msra.mxu0 %v922
        %954 = vmatprep.subr.mxu0 0.0
        %955 = vmatpush1.msra.mxu0 %v923
        %956 = vmatprep.subr.mxu0 0.0
        %957 = vmatpush1.msra.mxu0 0.0
        %958 = vmatprep.subr.mxu0 0.0
        %959 = vmatpush1.msra.mxu0 0.0
        %960 = vmatprep.subr.mxu0 0.0
        %961 = vmatpush1.msra.mxu0 0.0
        %962 = vmatprep.subr.mxu0 0.0
        %963 = vmatpush1.msra.mxu0 0.0
        %964 = vmatprep.subr.mxu0 0.0
        %965 = vmatpush1.msra.mxu0 0.0
        %966 = vmatprep.subr.mxu0 0.0
        %967 = vmatpush1.msra.mxu0 0.0
        %968 = vmatprep.subr.mxu0 0.0
        %969 = vmatpush1.msra.mxu0 0.0
        %970 = vmatprep.subr.mxu0 0.0
        %971 = vmatpush1.msra.mxu0 0.0
        %972 = vmatprep.subr.mxu0 0.0
        %973 = vmatpush1.msra.mxu0 0.0
        %974 = vmatprep.subr.mxu0 0.0
        %975 = vmatpush1.msra.mxu0 0.0
        %976 = vmatprep.subr.mxu0 0.0
        %977 = vmatpush1.msra.mxu0 0.0
        %978 = vmatprep.subr.mxu0 0.0
        %979 = vmatpush1.msra.mxu0 0.0
        %980 = vmatprep.subr.mxu0 0.0
        %981 = vmatpush1.msra.mxu0 0.0
        %982 = vmatprep.subr.mxu0 0.0
        %983 = vmatpush1.msra.mxu0 0.0
        %984 = vmatprep.subr.mxu0 0.0
        %985 = vmatpush1.msra.mxu0 0.0
        %986 = vmatprep.subr.mxu0 0.0
        %987 = vmatpush1.msra.mxu0 0.0
        %988 = vmatprep.mubr.f32.mxu0 0.0
        %989 = vmatmul.mubr.f32.gmra.mrb[0].mxu0 %v888
        %v990 = vpop.f32.mrb[0].mxu0
        %v991 = vadd.f32 0.0, %v990
        %v992 = vpop.f32.mrb[0].mxu0
        %993 = vmatprep.mubr.f32.mxu0 0.0
        %994 = vmatmul.mubr.f32.gmra.mrb[0].mxu0 %v889
        %v995 = vpop.f32.mrb[0].mxu0
        %v996 = vadd.f32 0.0, %v995
        %v997 = vpop.f32.mrb[0].mxu0
        %998 = vdwg.mxu0
        %999 = vst [vmem:[%s426] sm:$0xff] %v906
        %1000 = vst [vmem:[%s426 + $0x8] sm:$0xff] %v907
        %vm1001 = vcmask 64512
        %1002 = vst.msk [vmem:[%s445] sm:$0xff] %vm1001, %v991
        %1003 = vst.msk [vmem:[%s445 + $0x8] sm:$0xff] %vm1001, %v996
        %s1004 = sand.u32 %s252, 1
        %s1005 = scalar_lea.sflag [#allocation5], %s1004
        %s1006 = sand.u32 %s252, 1
        %s1007 = smul.addr %s1006, 16
        %s1008 = scalar_lea.vmem [#allocation9], %s1007
        %s1009 = smul.u32 2, %s29
        %p1010 = scmp.lt.s32.totalorder %s1009, 3
        %s1011 = scalar_select %p1010, %s1009, 3
        %s1012 = smul.addr %s1011, 8
        %s1013 = scalar_lea.vmem %s11, %s1012
        // Predicated region
        $region73: #{tpu_custom_call.1} parent=59 // pred_check
          %p1014 = pneg %p262
        $region74: #{tpu_custom_call.1} parent=59 // pred_check_branch
          %1016 = sbr.rel (%p1014) target = $region76
        $region75: #{tpu_custom_call.1} parent=59 // pred_region
          %s1017 = smul.u32 2, %s29
          %s1019 = ssub.s32 256, 256
          %1020 = vsyncadd %s1005, %s1019
          %s1021 = smul.addr %s1017, 128
          %s1022 = scalar_lea.hbm %s10, %s1021
          %s1023 = sshll.u32 %s1008, 4
          %s1024 = int_to_ptr.vmem [resolvable:$true] %s1023
          %1029 = dma.vmem_to_hbm [thread:$0]  %s1024, 256, %s1022, %s1005, 128, 128, 8
        $region76: #{tpu_custom_call.1} parent=59 // pred_fallthru
          _
        // Predicated region
        $region77: #{tpu_custom_call.1} parent=59 // pred_check
          %p1030 = pneg %p288
        $region78: #{tpu_custom_call.1} parent=59 // pred_check_branch
          %1032 = sbr.rel (%p1030) target = $region80
        $region79: #{tpu_custom_call.1} parent=59 // pred_region
          %s1033 = smul.u32 2, %s29
        $region80: #{tpu_custom_call.1} parent=59 // pred_fallthru
          _
      $region60: #{tpu_custom_call.1} parent=5 // pred_fallthru
        _
      %p1034 = scmp.le.s32.totalorder 2, %s24
      // Predicated region
      $region81: #{tpu_custom_call.1} parent=5 // pred_check
        %p1035 = pneg %p1034
      $region82: #{tpu_custom_call.1} parent=5 // pred_check_branch
        %1037 = sbr.rel (%p1035) target = $region84
      $region83: #{tpu_custom_call.1} parent=5 // pred_region
        %s1038 = ssub.s32 %s24, 2
        // Predicated region
        $region85: #{tpu_custom_call.1} parent=83 // pred_check
          %p1039 = pneg %p268
        $region86: #{tpu_custom_call.1} parent=83 // pred_check_branch
          %1041 = sbr.rel (%p1039) target = $region88
        $region87: #{tpu_custom_call.1} parent=83 // pred_region
          %s1042 = sand.u32 %s253, 1
          %s1043 = scalar_lea.sflag [#allocation5], %s1042
          %s1044 = sand.u32 %s253, 1
          %s1045 = smul.addr %s1044, 16
          %s1046 = scalar_lea.vmem [#allocation9], %s1045
          %1047 = dma.done %s1043, 256
        $region88: #{tpu_custom_call.1} parent=83 // pred_fallthru
          _
        // Predicated region
        $region89: #{tpu_custom_call.1} parent=83 // pred_check
          %p1048 = pneg %p294
        $region90: #{tpu_custom_call.1} parent=83 // pred_check_branch
          %1050 = sbr.rel (%p1048) target = $region92
        $region91: #{tpu_custom_call.1} parent=83 // pred_region
          %s1051 = smul.u32 2, %s30
          %p1052 = scmp.lt.s32.totalorder %s1051, 3
          %s1053 = scalar_select %p1052, %s1051, 3
          %s1054 = smul.addr %s1053, 8
          %s1055 = scalar_lea.vmem %s11, %s1054
        $region92: #{tpu_custom_call.1} parent=83 // pred_fallthru
          _
      $region84: #{tpu_custom_call.1} parent=5 // pred_fallthru
        _
    $region6: #{tpu_custom_call.1} parent=1 // loop_footer
      %s28 = sadd.s32 1, %s24
    $region7: #{tpu_custom_call.1} parent=1 // loop_footer_branch
      %23 = sbr.rel target = $region3
    $region8: #{tpu_custom_call.1} parent=1 // loop_exit
      _
    %1056 = vsyncpa [#allocation4], 1
    %s1057 = scalar_lea.sflag [#allocation4], 1
    %1058 = vsyncpa %s1057, 1
    %1059 = vsyncpa [#allocation7], 1
    %1060 = vsyncpa [#allocation5], 1
    %s1061 = scalar_lea.sflag [#allocation5], 1
    %1062 = vsyncpa %s1061, 1

</llo_original>
